<compile_context>
chip_gen: v7x
topology: tpu7x:2x2x1
jax: 0.10.0
libtpu: 0.0.40
codegen_flags: <defaults>
</compile_context>

<pallas_src>
import jax
import jax.numpy as jnp
from jax import lax
from jax.experimental import pallas as pl
from jax.experimental.pallas import tpu as pltpu

B = 2            # batch
L = 128          # ts_input_size
CIN = 1          # input channels (time series)
C1 = 8           # conv1 out channels
C2 = 16          # conv2 out channels == n_channels
K = 3            # conv kernel size (padding = 1, 'same')

# packed-parameter column layout inside a single (C2, PCOLS) f32 slab
_W1_C0 = 0                     # cols [0, K)            rows [0, C1): conv1 taps (C1, K)
_B1_C = K                      # col K                  rows [0, C1): conv1 bias
_W2_C0 = K + 1                 # cols [K+1, K+1+K*C1)   rows [0, C2): conv2 taps (C2, K*C1)
_B2_C = _W2_C0 + K * C1        # col                    rows [0, C2): conv2 bias
_WFC_C = _B2_C + 1             # col                    rows [0, C2): fc weight (as column)
_BFC_C = _WFC_C + 1            # col, row 0                         : fc bias
PCOLS = _BFC_C + 1             # = 31


def detector_kernel(x_ref, p_ref, out_ref):
    length = x_ref.shape[1]
    inv_len = 1.0 / float(length)

    x = x_ref[...]                                     # (B, L)   time on lanes
    p = p_ref[...]                                     # (C2, PCOLS)

    # unpack parameters (static slices of a loaded vreg slab)
    w1 = p[0:C1, _W1_C0:_W1_C0 + K]                    # (C1, K)
    b1 = p[0:C1, _B1_C:_B1_C + 1]                      # (C1, 1)
    w2s = p[:, _W2_C0:_W2_C0 + K * C1]                 # (C2, K*C1), col = k*C1 + ci
    b2 = p[:, _B2_C:_B2_C + 1]                         # (C2, 1)
    wfc_col = p[:, _WFC_C:_WFC_C + 1]                  # (C2, 1)
    bfc = p[0:1, _BFC_C:_BFC_C + 1]                    # (1, 1)

    # boundary masks for 'same' padding -- built once, reused everywhere
    col = lax.broadcasted_iota(jnp.int32, (1, length), 1)
    not_first = (col != 0).astype(jnp.float32)         # zeroes column t == 0
    not_last = (col != length - 1).astype(jnp.float32)  # zeroes column t == L-1

    # zero-padded shifted views of x (non-negative shifts only)
    x_m1 = pltpu.roll(x, shift=1, axis=1) * not_first           # x[t-1]
    x_p1 = pltpu.roll(x, shift=length - 1, axis=1) * not_last   # x[t+1]

    # tiny static (unrolled) batch loop: everything stays 2-D and lowerable
    for b in range(B):
        xb = x[b:b + 1, :]                              # (1, L)
        xb_m1 = x_m1[b:b + 1, :]
        xb_p1 = x_p1[b:b + 1, :]

        # conv1 (CIN == 1): pure VPU outer-product broadcast, MXU stays free
        h1 = (w1[:, 0:1] * xb_m1 + w1[:, 1:2] * xb + w1[:, 2:3] * xb_p1 + b1)
        h1 = jnp.maximum(h1, 0.0)                       # (C1, L)

        h1_m1 = pltpu.roll(h1, shift=1, axis=1) * not_first
        h1_p1 = pltpu.roll(h1, shift=length - 1, axis=1) * not_last

        # conv2: one stacked MXU matmul (C2, 3*C1) x (3*C1, L)
        stacked = jnp.concatenate([h1_m1, h1, h1_p1], axis=0)   # (3*C1, L)
        h2 = jnp.dot(w2s, stacked, preferred_element_type=jnp.float32) + b2
        h2 = jnp.maximum(h2, 0.0)                       # (C2, L)

        # fused mean-pool + fc: weighted lane/sublane reduction on the XLU
        s = jnp.sum(h2 * wfc_col, axis=1, keepdims=True)   # (C2, 1)
        s = jnp.sum(s, axis=0, keepdims=True)              # (1, 1)
        out_ref[0:1, b:b + 1] = s * inv_len + bfc
    # TODO(synk): for large B, tile the batch along sublanes (>=512 rows/step)
    # and keep the logits lane-dense; bf16 activations are an option on
    # v6e/v7x (not v5e). Irrelevant at this toy size.


def pack_params(params):
    """Pack all six parameter tensors into one (C2, PCOLS) f32 slab."""
    w1, b1, w2, b2, wfc, bfc = params
    w1_2d = w1.reshape(C1, K)                                  # CIN == 1
    # (C2, C1, K) -> (C2, K*C1) with column index k*C1 + ci == w2[co, ci, k]
    w2s = jnp.transpose(w2, (0, 2, 1)).reshape(C2, K * C1)
    p = jnp.zeros((C2, PCOLS), jnp.float32)
    p = p.at[0:C1, _W1_C0:_W1_C0 + K].set(w1_2d)
    p = p.at[0:C1, _B1_C].set(b1)
    p = p.at[:, _W2_C0:_W2_C0 + K * C1].set(w2s)
    p = p.at[:, _B2_C].set(b2)
    p = p.at[:, _WFC_C].set(wfc.reshape(C2))
    p = p.at[0, _BFC_C].set(bfc[0])
    return p


def detector_forward(x, params):
    """x: (B, CIN, L) float32  ->  logits (B, 1) float32."""
    x2d = x.reshape(B, L)                 # CIN == 1: drop the channel axis
    packed = pack_params(params)
    out = pl.pallas_call(
        detector_kernel,
        out_shape=jax.ShapeDtypeStruct((1, B), jnp.float32),
        grid=(1,),                        # single step: whole batch at once
        in_specs=[
            pl.BlockSpec((B, L), lambda i: (0, 0)),          # x (full array)
            pl.BlockSpec((C2, PCOLS), lambda i: (0, 0)),     # packed params
        ],
        out_specs=pl.BlockSpec((1, B), lambda i: (0, 0)),
        compiler_params=pltpu.CompilerParams(
            dimension_semantics=("arbitrary",)),
    )(x2d, packed)
    return out.reshape(B, 1)


def ref_forward(x, params):
    """Pure-JAX reference mirroring the PyTorch forward."""
    w1, b1, w2, b2, wfc, bfc = params
    dn = ("NCH", "OIH", "NCH")
    h = lax.conv_general_dilated(x, w1, (1,), ((1, 1),), dimension_numbers=dn)
    h = jax.nn.relu(h + b1[None, :, None])
    h = lax.conv_general_dilated(h, w2, (1,), ((1, 1),), dimension_numbers=dn)
    h = jax.nn.relu(h + b2[None, :, None])
    emb = jnp.mean(h, axis=-1)                 # (B, C2)
    return emb @ wfc.T + bfc[None, :]          # (B, 1)


def init_params(key):
    ks = jax.random.split(key, 6)
    w1 = 0.1 * jax.random.normal(ks[0], (C1, CIN, K), jnp.float32)
    b1 = 0.1 * jax.random.normal(ks[1], (C1,), jnp.float32)
    w2 = 0.1 * jax.random.normal(ks[2], (C2, C1, K), jnp.float32)
    b2 = 0.1 * jax.random.normal(ks[3], (C2,), jnp.float32)
    wfc = 0.1 * jax.random.normal(ks[4], (1, C2), jnp.float32)
    bfc = 0.1 * jax.random.normal(ks[5], (1,), jnp.float32)
    return (w1, b1, w2, b2, wfc, bfc)


if __name__ == "__main__":
    key = jax.random.PRNGKey(0)
    k_x, k_p = jax.random.split(key)
    x = jax.random.normal(k_x, (B, CIN, L), jnp.float32)   # (batch, 1, ts_input_size)
    params = init_params(k_p)

    out = detector_forward(x, params)
    out = jax.block_until_ready(out)

    ref = ref_forward(x, params)
    assert out.shape == (B, 1)
    assert jnp.allclose(out, ref, rtol=1e-4, atol=1e-4), (out, ref)

    print("KERNEL_OK")
</pallas_src>

<mosaic_0001>
module attributes {stable_mosaic.version = 11 : i64} {
  func.func @detector_kernel(%arg0: i32, %arg1: memref<2x128xf32, #tpu.memory_space<vmem>>, %arg2: memref<16x31xf32, #tpu.memory_space<vmem>>, %arg3: memref<1x2xf32, #tpu.memory_space<vmem>>) attributes {dimension_semantics = [#tpu.dimension_semantics<arbitrary>], iteration_bounds = array<i64: 1>, scalar_prefetch = 0 : i64, scratch_operands = 0 : i64, tpu.core_type = #tpu.core_type<tc>, window_params = [{pipeline_mode = #tpu.pipeline_mode<synchronous>, transform_indices = @transform_0, window_bounds = array<i64: 2, 128>}, {pipeline_mode = #tpu.pipeline_mode<synchronous>, transform_indices = @transform_1, window_bounds = array<i64: 16, 31>}, {pipeline_mode = #tpu.pipeline_mode<synchronous>, transform_indices = @transform_2, window_bounds = array<i64: 1, 2>}]} {
    %c0 = arith.constant 0 : index
    %c0_0 = arith.constant 0 : index
    %0 = vector.load %arg1[%c0, %c0_0] : memref<2x128xf32, #tpu.memory_space<vmem>>, vector<2x128xf32>
    %c0_1 = arith.constant 0 : index
    %c0_2 = arith.constant 0 : index
    %1 = vector.load %arg2[%c0_1, %c0_2] : memref<16x31xf32, #tpu.memory_space<vmem>>, vector<16x31xf32>
    %2 = vector.extract_strided_slice %1 {offsets = [0, 0], sizes = [8, 3], strides = [1, 1]} : vector<16x31xf32> to vector<8x3xf32>
    %3 = vector.extract_strided_slice %1 {offsets = [0, 3], sizes = [8, 1], strides = [1, 1]} : vector<16x31xf32> to vector<8x1xf32>
    %4 = vector.extract_strided_slice %1 {offsets = [0, 4], sizes = [16, 24], strides = [1, 1]} : vector<16x31xf32> to vector<16x24xf32>
    %5 = vector.extract_strided_slice %1 {offsets = [0, 28], sizes = [16, 1], strides = [1, 1]} : vector<16x31xf32> to vector<16x1xf32>
    %6 = vector.extract_strided_slice %1 {offsets = [0, 29], sizes = [16, 1], strides = [1, 1]} : vector<16x31xf32> to vector<16x1xf32>
    %7 = vector.extract_strided_slice %1 {offsets = [0, 30], sizes = [1, 1], strides = [1, 1]} : vector<16x31xf32> to vector<1x1xf32>
    %8 = tpu.iota {dimensions = array<i32: 1>} : vector<1x128xi32>
    %c0_i32 = arith.constant 0 : i32
    %9 = vector.broadcast %c0_i32 : i32 to vector<1x128xi32>
    %10 = arith.cmpi ne, %8, %9 : vector<1x128xi32>
    %11 = arith.extui %10 : vector<1x128xi1> to vector<1x128xi32>
    %12 = arith.sitofp %11 : vector<1x128xi32> to vector<1x128xf32>
    %c127_i32 = arith.constant 127 : i32
    %13 = vector.broadcast %c127_i32 : i32 to vector<1x128xi32>
    %14 = arith.cmpi ne, %8, %13 : vector<1x128xi32>
    %15 = arith.extui %14 : vector<1x128xi1> to vector<1x128xi32>
    %16 = arith.sitofp %15 : vector<1x128xi32> to vector<1x128xf32>
    %c1_i32 = arith.constant 1 : i32
    %17 = tpu.dynamic_rotate %0 by %c1_i32 dim 1 : vector<2x128xf32>, i32 -> vector<2x128xf32>
    %18 = vector.broadcast %12 : vector<1x128xf32> to vector<2x128xf32>
    %19 = arith.mulf %17, %18 : vector<2x128xf32>
    %c127_i32_3 = arith.constant 127 : i32
    %20 = tpu.dynamic_rotate %0 by %c127_i32_3 dim 1 : vector<2x128xf32>, i32 -> vector<2x128xf32>
    %21 = vector.broadcast %16 : vector<1x128xf32> to vector<2x128xf32>
    %22 = arith.mulf %20, %21 : vector<2x128xf32>
    %23 = vector.extract_strided_slice %0 {offsets = [0, 0], sizes = [1, 128], strides = [1, 1]} : vector<2x128xf32> to vector<1x128xf32>
    %24 = vector.extract_strided_slice %19 {offsets = [0, 0], sizes = [1, 128], strides = [1, 1]} : vector<2x128xf32> to vector<1x128xf32>
    %25 = vector.extract_strided_slice %22 {offsets = [0, 0], sizes = [1, 128], strides = [1, 1]} : vector<2x128xf32> to vector<1x128xf32>
    %26 = vector.extract_strided_slice %2 {offsets = [0, 0], sizes = [8, 1], strides = [1, 1]} : vector<8x3xf32> to vector<8x1xf32>
    %27 = vector.broadcast %26 : vector<8x1xf32> to vector<8x128xf32>
    %28 = vector.broadcast %24 : vector<1x128xf32> to vector<8x128xf32>
    %29 = arith.mulf %27, %28 : vector<8x128xf32>
    %30 = vector.extract_strided_slice %2 {offsets = [0, 1], sizes = [8, 1], strides = [1, 1]} : vector<8x3xf32> to vector<8x1xf32>
    %31 = vector.broadcast %30 : vector<8x1xf32> to vector<8x128xf32>
    %32 = vector.broadcast %23 : vector<1x128xf32> to vector<8x128xf32>
    %33 = arith.mulf %31, %32 : vector<8x128xf32>
    %34 = arith.addf %29, %33 : vector<8x128xf32>
    %35 = vector.extract_strided_slice %2 {offsets = [0, 2], sizes = [8, 1], strides = [1, 1]} : vector<8x3xf32> to vector<8x1xf32>
    %36 = vector.broadcast %35 : vector<8x1xf32> to vector<8x128xf32>
    %37 = vector.broadcast %25 : vector<1x128xf32> to vector<8x128xf32>
    %38 = arith.mulf %36, %37 : vector<8x128xf32>
    %39 = arith.addf %34, %38 : vector<8x128xf32>
    %40 = vector.broadcast %3 : vector<8x1xf32> to vector<8x128xf32>
    %41 = arith.addf %39, %40 : vector<8x128xf32>
    %cst = arith.constant 0.000000e+00 : f32
    %42 = vector.broadcast %cst : f32 to vector<8x128xf32>
    %43 = arith.maximumf %41, %42 : vector<8x128xf32>
    %c1_i32_4 = arith.constant 1 : i32
    %44 = tpu.dynamic_rotate %43 by %c1_i32_4 dim 1 : vector<8x128xf32>, i32 -> vector<8x128xf32>
    %45 = vector.broadcast %12 : vector<1x128xf32> to vector<8x128xf32>
    %46 = arith.mulf %44, %45 : vector<8x128xf32>
    %c127_i32_5 = arith.constant 127 : i32
    %47 = tpu.dynamic_rotate %43 by %c127_i32_5 dim 1 : vector<8x128xf32>, i32 -> vector<8x128xf32>
    %48 = vector.broadcast %16 : vector<1x128xf32> to vector<8x128xf32>
    %49 = arith.mulf %47, %48 : vector<8x128xf32>
    %50 = tpu.concatenate %46, %43, %49 in 0 : vector<8x128xf32>, vector<8x128xf32>, vector<8x128xf32> -> vector<24x128xf32>
    %cst_6 = arith.constant dense<0.000000e+00> : vector<16x128xf32>
    %51 = tpu.matmul %4, %50, %cst_6 {dimension_numbers = #tpu.dot_dimension_numbers<[1], [0], [0], [1], [0, 0, 1, 1], [], []>} : vector<16x24xf32>, vector<24x128xf32>, vector<16x128xf32> -> vector<16x128xf32>
    %52 = vector.broadcast %5 : vector<16x1xf32> to vector<16x128xf32>
    %53 = arith.addf %51, %52 : vector<16x128xf32>
    %cst_7 = arith.constant 0.000000e+00 : f32
    %54 = vector.broadcast %cst_7 : f32 to vector<16x128xf32>
    %55 = arith.maximumf %53, %54 : vector<16x128xf32>
    %56 = vector.broadcast %6 : vector<16x1xf32> to vector<16x128xf32>
    %57 = arith.mulf %55, %56 : vector<16x128xf32>
    %cst_8 = arith.constant dense<0.000000e+00> : vector<16xf32>
    %58 = vector.multi_reduction <add>, %57, %cst_8 [1] : vector<16x128xf32> to vector<16xf32>
    %59 = vector.shape_cast %58 : vector<16xf32> to vector<16x1xf32>
    %cst_9 = arith.constant dense<0.000000e+00> : vector<1xf32>
    %60 = vector.multi_reduction <add>, %59, %cst_9 [0] : vector<16x1xf32> to vector<1xf32>
    %61 = vector.shape_cast %60 : vector<1xf32> to vector<1x1xf32>
    %cst_10 = arith.constant 7.812500e-03 : f32
    %62 = vector.broadcast %cst_10 : f32 to vector<1x1xf32>
    %63 = arith.mulf %61, %62 : vector<1x1xf32>
    %64 = arith.addf %63, %7 : vector<1x1xf32>
    %c0_11 = arith.constant 0 : index
    %c0_12 = arith.constant 0 : index
    %65 = vector.load %arg3[%c0_11, %c0_12] : memref<1x2xf32, #tpu.memory_space<vmem>>, vector<1x1xf32>
    tpu.vector_store %arg3[%c0_11, %c0_12], %64 {strides = array<i32>} : memref<1x2xf32, #tpu.memory_space<vmem>>, vector<1x1xf32>,
    %66 = vector.extract_strided_slice %0 {offsets = [1, 0], sizes = [1, 128], strides = [1, 1]} : vector<2x128xf32> to vector<1x128xf32>
    %67 = vector.extract_strided_slice %19 {offsets = [1, 0], sizes = [1, 128], strides = [1, 1]} : vector<2x128xf32> to vector<1x128xf32>
    %68 = vector.extract_strided_slice %22 {offsets = [1, 0], sizes = [1, 128], strides = [1, 1]} : vector<2x128xf32> to vector<1x128xf32>
    %69 = vector.extract_strided_slice %2 {offsets = [0, 0], sizes = [8, 1], strides = [1, 1]} : vector<8x3xf32> to vector<8x1xf32>
    %70 = vector.broadcast %69 : vector<8x1xf32> to vector<8x128xf32>
    %71 = vector.broadcast %67 : vector<1x128xf32> to vector<8x128xf32>
    %72 = arith.mulf %70, %71 : vector<8x128xf32>
    %73 = vector.extract_strided_slice %2 {offsets = [0, 1], sizes = [8, 1], strides = [1, 1]} : vector<8x3xf32> to vector<8x1xf32>
    %74 = vector.broadcast %73 : vector<8x1xf32> to vector<8x128xf32>
    %75 = vector.broadcast %66 : vector<1x128xf32> to vector<8x128xf32>
    %76 = arith.mulf %74, %75 : vector<8x128xf32>
    %77 = arith.addf %72, %76 : vector<8x128xf32>
    %78 = vector.extract_strided_slice %2 {offsets = [0, 2], sizes = [8, 1], strides = [1, 1]} : vector<8x3xf32> to vector<8x1xf32>
    %79 = vector.broadcast %78 : vector<8x1xf32> to vector<8x128xf32>
    %80 = vector.broadcast %68 : vector<1x128xf32> to vector<8x128xf32>
    %81 = arith.mulf %79, %80 : vector<8x128xf32>
    %82 = arith.addf %77, %81 : vector<8x128xf32>
    %83 = vector.broadcast %3 : vector<8x1xf32> to vector<8x128xf32>
    %84 = arith.addf %82, %83 : vector<8x128xf32>
    %cst_13 = arith.constant 0.000000e+00 : f32
    %85 = vector.broadcast %cst_13 : f32 to vector<8x128xf32>
    %86 = arith.maximumf %84, %85 : vector<8x128xf32>
    %c1_i32_14 = arith.constant 1 : i32
    %87 = tpu.dynamic_rotate %86 by %c1_i32_14 dim 1 : vector<8x128xf32>, i32 -> vector<8x128xf32>
    %88 = vector.broadcast %12 : vector<1x128xf32> to vector<8x128xf32>
    %89 = arith.mulf %87, %88 : vector<8x128xf32>
    %c127_i32_15 = arith.constant 127 : i32
    %90 = tpu.dynamic_rotate %86 by %c127_i32_15 dim 1 : vector<8x128xf32>, i32 -> vector<8x128xf32>
    %91 = vector.broadcast %16 : vector<1x128xf32> to vector<8x128xf32>
    %92 = arith.mulf %90, %91 : vector<8x128xf32>
    %93 = tpu.concatenate %89, %86, %92 in 0 : vector<8x128xf32>, vector<8x128xf32>, vector<8x128xf32> -> vector<24x128xf32>
    %cst_16 = arith.constant dense<0.000000e+00> : vector<16x128xf32>
    %94 = tpu.matmul %4, %93, %cst_16 {dimension_numbers = #tpu.dot_dimension_numbers<[1], [0], [0], [1], [0, 0, 1, 1], [], []>} : vector<16x24xf32>, vector<24x128xf32>, vector<16x128xf32> -> vector<16x128xf32>
    %95 = vector.broadcast %5 : vector<16x1xf32> to vector<16x128xf32>
    %96 = arith.addf %94, %95 : vector<16x128xf32>
    %cst_17 = arith.constant 0.000000e+00 : f32
    %97 = vector.broadcast %cst_17 : f32 to vector<16x128xf32>
    %98 = arith.maximumf %96, %97 : vector<16x128xf32>
    %99 = vector.broadcast %6 : vector<16x1xf32> to vector<16x128xf32>
    %100 = arith.mulf %98, %99 : vector<16x128xf32>
    %cst_18 = arith.constant dense<0.000000e+00> : vector<16xf32>
    %101 = vector.multi_reduction <add>, %100, %cst_18 [1] : vector<16x128xf32> to vector<16xf32>
    %102 = vector.shape_cast %101 : vector<16xf32> to vector<16x1xf32>
    %cst_19 = arith.constant dense<0.000000e+00> : vector<1xf32>
    %103 = vector.multi_reduction <add>, %102, %cst_19 [0] : vector<16x1xf32> to vector<1xf32>
    %104 = vector.shape_cast %103 : vector<1xf32> to vector<1x1xf32>
    %cst_20 = arith.constant 7.812500e-03 : f32
    %105 = vector.broadcast %cst_20 : f32 to vector<1x1xf32>
    %106 = arith.mulf %104, %105 : vector<1x1xf32>
    %107 = arith.addf %106, %7 : vector<1x1xf32>
    %c0_21 = arith.constant 0 : index
    %c1 = arith.constant 1 : index
    %108 = vector.load %arg3[%c0_21, %c1] : memref<1x2xf32, #tpu.memory_space<vmem>>, vector<1x1xf32>
    tpu.vector_store %arg3[%c0_21, %c1], %107 {strides = array<i32>} : memref<1x2xf32, #tpu.memory_space<vmem>>, vector<1x1xf32>,
    return
  }
  func.func @transform_0(%arg0: i32) -> (i32, i32) {
    %c0_i32 = arith.constant 0 : i32
    %c0_i32_0 = arith.constant 0 : i32
    %c0_i32_1 = arith.constant 0 : i32
    return %c0_i32, %c0_i32_0 : i32, i32
  }
  func.func @transform_1(%arg0: i32) -> (i32, i32) {
    %c0_i32 = arith.constant 0 : i32
    %c0_i32_0 = arith.constant 0 : i32
    %c0_i32_1 = arith.constant 0 : i32
    return %c0_i32, %c0_i32_0 : i32, i32
  }
  func.func @transform_2(%arg0: i32) -> (i32, i32) {
    %c0_i32 = arith.constant 0 : i32
    %c0_i32_0 = arith.constant 0 : i32
    %c0_i32_1 = arith.constant 0 : i32
    return %c0_i32, %c0_i32_0 : i32, i32
  }
}

</mosaic_0001>

<llo_original>
// kernel: tpu_custom_call.1
$region0: #{tpu_custom_call.1}
  #allocation0 [shape = 'u32[]', space=smem, size = 0x4, offset = 0x4, fixed_abs, tag = 'smem constant byte address 0x4 - core index']
  #allocation1 [shape = 'u32[144,128]{1,0:T(1,128)}', space=vmem, size = 0x12000, scoped, tag = 'internal scratch']
  %s0 = inlined_call_operand.hbm [shape: f32[2,128], index: 0, kind: input, shape index: {}]
  %s1 = inlined_call_operand.hbm [shape: f32[16,31], index: 1, kind: input, shape index: {}]
  %s2 = inlined_call_operand.hbm [shape: f32[1,2], index: 2, kind: output, shape index: {}]
  %s3 = sld [smem:[#allocation0]]
  $region26: #{tpu_custom_call.1} parent=0
    _
  %s5 = ssub.s32 1, %s3
  %s6 = scalar_select 0, %s5, %s3
  $region1: #{tpu_custom_call.1} parent=0
    #allocation2 [shape = 'u8[1024]{0}', space=vmem, size = 0x400, scoped, tag = 'input window, operand 0, single buffered']
    #allocation3 [shape = 's32[1]{0}', space=sflag, size = 0x4, scoped, tag = 'scoped memory for tpu_custom_call.1']
    #allocation4 [shape = 's32[1]{0}', space=sflag, size = 0x4, scoped, tag = 'scoped memory for tpu_custom_call.1']
    #allocation5 [shape = 'u8[8192]{0}', space=vmem, size = 0x2000, scoped, tag = 'input window, operand 1, single buffered']
    #allocation6 [shape = 's32[1]{0}', space=sflag, size = 0x4, scoped, tag = 'scoped memory for tpu_custom_call.1']
    #allocation7 [shape = 'u8[512]{0}', space=vmem, size = 0x400, scoped, tag = 'output window, operand 0, single buffered']
    %7 = vsyncpa [#allocation3], 0
    %8 = vsyncpa [#allocation6], 0
    %9 = vsyncpa [#allocation4], 0
    // Predicated region
    $region2: #{tpu_custom_call.1} parent=1 // pred_check
      _
    $region3: #{tpu_custom_call.1} parent=1 // pred_check_branch
      %11 = sbr.rel (0) target = $region5
    $region4: #{tpu_custom_call.1} parent=1 // pred_region
      %s13 = ssub.s32 32, 32
      %14 = vsyncadd [#allocation3], %s13
      %s16 = sshll.u32 [#allocation2], 4
      %s17 = int_to_ptr.vmem [resolvable:$true] %s16
      %19 = dma.hbm_to_vmem [thread:$0]  %s0, 32, %s17, [#allocation3]
    $region5: #{tpu_custom_call.1} parent=1 // pred_fallthru
      _
    // Predicated region
    $region6: #{tpu_custom_call.1} parent=1 // pred_check
      _
    $region7: #{tpu_custom_call.1} parent=1 // pred_check_branch
      %21 = sbr.rel (0) target = $region9
    $region8: #{tpu_custom_call.1} parent=1 // pred_region
      %s23 = ssub.s32 256, 256
      %24 = vsyncadd [#allocation6], %s23
      %s25 = sshll.u32 [#allocation5], 4
      %s26 = int_to_ptr.vmem [resolvable:$true] %s25
      %31 = dma.hbm_to_vmem [thread:$0]  %s1, 256, %s26, [#allocation6], 128, 128, 8
    $region9: #{tpu_custom_call.1} parent=1 // pred_fallthru
      _
    // Predicated region
    $region10: #{tpu_custom_call.1} parent=1 // pred_check
      _
    $region11: #{tpu_custom_call.1} parent=1 // pred_check_branch
      %33 = sbr.rel (0) target = $region13
    $region12: #{tpu_custom_call.1} parent=1 // pred_region
      %34 = dma.done [#allocation3], 32
    $region13: #{tpu_custom_call.1} parent=1 // pred_fallthru
      _
    // Predicated region
    $region14: #{tpu_custom_call.1} parent=1 // pred_check
      _
    $region15: #{tpu_custom_call.1} parent=1 // pred_check_branch
      %36 = sbr.rel (0) target = $region17
    $region16: #{tpu_custom_call.1} parent=1 // pred_region
      %37 = dma.done [#allocation6], 256
    $region17: #{tpu_custom_call.1} parent=1 // pred_fallthru
      _
    %v38 = vld [vmem:[#allocation2] sm:$0x3]
    %v39 = vld [vmem:[#allocation5] sm:$0xff]
    %v40 = vld [vmem:[#allocation5 + $0x8] sm:$0xff]
    %v41 = vlaneseq
    %v42 = vand.u32 %v41, 127
    %vm43 = vcmp.ne.s32.totalorder %v42, 0
    %v44 = vsel %vm43, 1, 0
    %v45 = vcvt.s32.f32 %v44
    %vm46 = vcmp.ne.s32.totalorder %v42, 127
    %v47 = vsel %vm46, 1, 0
    %v48 = vcvt.s32.f32 %v47
    %49 = vrot.lane.b32.xlu0 %v38, 1
    %v50 = vpop.permute.xlu0 %49
    %v51 = vmul.f32 %v50, %v45
    %52 = vrot.lane.b32.xlu0 %v38, 127
    %v53 = vpop.permute.xlu0 %52
    %v54 = vmul.f32 %v53, %v48
    %56 = vset.pattern.permute.xlu0 0
    %57 = vperm.xlu0 %56, %v39
    %v58 = vpop.permute.xlu0 %57
    %v60 = vlaneseq
    %v61 = vshrl.u32 %v60, 7
    %v62 = vsub.s32 0, %v61
    %v63 = vrot.slane %v51, %v62
    %v64 = vmul.f32 %v58, %v63
    %65 = vset.pattern.permute.xlu0 1
    %66 = vperm.xlu0 %65, %v39
    %v67 = vpop.permute.xlu0 %66
    %v69 = vlaneseq
    %v70 = vshrl.u32 %v69, 7
    %v71 = vsub.s32 0, %v70
    %v72 = vrot.slane %v38, %v71
    %v73 = vmul.f32 %v67, %v72
    %v74 = vadd.f32 %v64, %v73
    %75 = vset.pattern.permute.xlu0 2
    %76 = vperm.xlu0 %75, %v39
    %v77 = vpop.permute.xlu0 %76
    %v79 = vlaneseq
    %v80 = vshrl.u32 %v79, 7
    %v81 = vsub.s32 0, %v80
    %v82 = vrot.slane %v54, %v81
    %v83 = vmul.f32 %v77, %v82
    %v84 = vadd.f32 %v74, %v83
    %85 = vset.pattern.permute.xlu0 3
    %86 = vperm.xlu0 %85, %v39
    %v87 = vpop.permute.xlu0 %86
    %v89 = vadd.f32 %v84, %v87
    %v90 = vmax.f32 %v89, 0.0
    %91 = vrot.lane.b32.xlu0 %v90, 1
    %v92 = vpop.permute.xlu0 %91
    %v93 = vmul.f32 %v92, %v45
    %94 = vrot.lane.b32.xlu0 %v90, 127
    %v95 = vpop.permute.xlu0 %94
    %v96 = vmul.f32 %v95, %v48
    %97 = vset.pattern.permute.xlu0 28
    %98 = vperm.xlu0 %97, %v39
    %v99 = vpop.permute.xlu0 %98
    %102 = vset.pattern.permute.xlu0 28
    %103 = vperm.xlu0 %102, %v40
    %v104 = vpop.permute.xlu0 %103
    %106 = vrot.lane.b32.xlu0 %v39, 124
    %v107 = vpop.permute.xlu0 %106
    %108 = vrot.lane.b32.xlu0 %v40, 124
    %v109 = vpop.permute.xlu0 %108
    %vm110 = vcmask 195584
    %v111 = vsel %vm110, %v107, 0
    %v113 = vsel %vm110, %v109, 0
    %115 = vmatprep.subr.mxu0 0.0
    %116 = vmatpush1.msra.mxu0 %v93
    %117 = vmatprep.subr.mxu0 0.0
    %118 = vmatpush1.msra.mxu0 %v90
    %119 = vmatprep.subr.mxu0 0.0
    %120 = vmatpush1.msra.mxu0 %v96
    %121 = vmatprep.subr.mxu0 0.0
    %122 = vmatpush1.msra.mxu0 0.0
    %123 = vmatprep.subr.mxu0 0.0
    %124 = vmatpush1.msra.mxu0 0.0
    %125 = vmatprep.subr.mxu0 0.0
    %126 = vmatpush1.msra.mxu0 0.0
    %127 = vmatprep.subr.mxu0 0.0
    %128 = vmatpush1.msra.mxu0 0.0
    %129 = vmatprep.subr.mxu0 0.0
    %130 = vmatpush1.msra.mxu0 0.0
    %131 = vmatprep.subr.mxu0 0.0
    %132 = vmatpush1.msra.mxu0 0.0
    %133 = vmatprep.subr.mxu0 0.0
    %134 = vmatpush1.msra.mxu0 0.0
    %135 = vmatprep.subr.mxu0 0.0
    %136 = vmatpush1.msra.mxu0 0.0
    %137 = vmatprep.subr.mxu0 0.0
    %138 = vmatpush1.msra.mxu0 0.0
    %139 = vmatprep.subr.mxu0 0.0
    %140 = vmatpush1.msra.mxu0 0.0
    %141 = vmatprep.subr.mxu0 0.0
    %142 = vmatpush1.msra.mxu0 0.0
    %143 = vmatprep.subr.mxu0 0.0
    %144 = vmatpush1.msra.mxu0 0.0
    %145 = vmatprep.subr.mxu0 0.0
    %146 = vmatpush1.msra.mxu0 0.0
    %147 = vmatprep.subr.mxu0 0.0
    %148 = vmatpush1.msra.mxu0 0.0
    %149 = vmatprep.subr.mxu0 0.0
    %150 = vmatpush1.msra.mxu0 0.0
    %151 = vmatprep.subr.mxu0 0.0
    %152 = vmatpush1.msra.mxu0 0.0
    %153 = vmatprep.subr.mxu0 0.0
    %154 = vmatpush1.msra.mxu0 0.0
    %155 = vmatprep.subr.mxu0 0.0
    %156 = vmatpush1.msra.mxu0 0.0
    %157 = vmatprep.subr.mxu0 0.0
    %158 = vmatpush1.msra.mxu0 0.0
    %159 = vmatprep.subr.mxu0 0.0
    %160 = vmatpush1.msra.mxu0 0.0
    %161 = vmatprep.subr.mxu0 0.0
    %162 = vmatpush1.msra.mxu0 0.0
    %163 = vmatprep.subr.mxu0 0.0
    %164 = vmatpush1.msra.mxu0 0.0
    %165 = vmatprep.subr.mxu0 0.0
    %166 = vmatpush1.msra.mxu0 0.0
    %167 = vmatprep.subr.mxu0 0.0
    %168 = vmatpush1.msra.mxu0 0.0
    %169 = vmatprep.subr.mxu0 0.0
    %170 = vmatpush1.msra.mxu0 0.0
    %171 = vmatprep.subr.mxu0 0.0
    %172 = vmatpush1.msra.mxu0 0.0
    %173 = vmatprep.subr.mxu0 0.0
    %174 = vmatpush1.msra.mxu0 0.0
    %175 = vmatprep.subr.mxu0 0.0
    %176 = vmatpush1.msra.mxu0 0.0
    %177 = vmatprep.subr.mxu0 0.0
    %178 = vmatpush1.msra.mxu0 0.0
    %179 = vmatprep.mubr.f32.mxu0 0.0
    %180 = vmatmul.mubr.f32.gmra.mrb[0].mxu0 %v111
    %v181 = vpop.f32.mrb[0].mxu0
    %v182 = vadd.f32 %v99, %v181
    %v183 = vpop.f32.mrb[0].mxu0
    %184 = vmatprep.mubr.f32.mxu0 0.0
    %185 = vmatmul.mubr.f32.gmra.mrb[0].mxu0 %v113
    %v186 = vpop.f32.mrb[0].mxu0
    %v187 = vadd.f32 %v104, %v186
    %v188 = vpop.f32.mrb[0].mxu0
    %189 = vdwg.mxu0
    %v190 = vmax.f32 %v182, 0.0
    %v191 = vmax.f32 %v187, 0.0
    %192 = vset.pattern.permute.xlu0 29
    %193 = vperm.xlu0 %192, %v39
    %v194 = vpop.permute.xlu0 %193
    %196 = vset.pattern.permute.xlu0 29
    %197 = vperm.xlu0 %196, %v40
    %v198 = vpop.permute.xlu0 %197
    %v200 = vmul.f32 %v190, %v194
    %v201 = vmul.f32 %v191, %v198
    %202 = vadd.xlane.f32.xlu0 %v200
    %v203 = vpop.xlane.xlu0 %202
    %204 = vadd.xlane.f32.xlu0 %v201
    %v205 = vpop.xlane.xlu0 %204
    %v206 = vadd.f32 %v203, %v205
    %v207 = vrot.slane %v206, 4
    %v208 = vadd.f32 %v206, %v207
    %v209 = vrot.slane %v208, 2
    %v210 = vadd.f32 %v208, %v209
    %v211 = vrot.slane %v210, 1
    %v212 = vadd.f32 %v210, %v211
    %v213 = vmul.f32 %v212, 0.0078125
    %v214 = vadd.f32 %v213, %v39
    %216 = vrot.lane.b32.xlu0 %v214, 98
    %v217 = vpop.permute.xlu0 %216
    %vm219 = vcmask 0
    %220 = vst.msk [vmem:[#allocation7] sm:$0x1] %vm219, %v217
    %v221 = vlaneseq
    %v222 = vshrl.u32 %v221, 7
    %v223 = vsub.s32 1, %v222
    %v224 = vrot.slane %v51, %v223
    %v225 = vmul.f32 %v58, %v224
    %v226 = vlaneseq
    %v227 = vshrl.u32 %v226, 7
    %v228 = vsub.s32 1, %v227
    %v229 = vrot.slane %v38, %v228
    %v230 = vmul.f32 %v67, %v229
    %v231 = vadd.f32 %v225, %v230
    %v232 = vlaneseq
    %v233 = vshrl.u32 %v232, 7
    %v234 = vsub.s32 1, %v233
    %v235 = vrot.slane %v54, %v234
    %v236 = vmul.f32 %v77, %v235
    %v237 = vadd.f32 %v231, %v236
    %v238 = vadd.f32 %v237, %v87
    %v239 = vmax.f32 %v238, 0.0
    %240 = vrot.lane.b32.xlu0 %v239, 1
    %v241 = vpop.permute.xlu0 %240
    %v242 = vmul.f32 %v241, %v45
    %243 = vrot.lane.b32.xlu0 %v239, 127
    %v244 = vpop.permute.xlu0 %243
    %v245 = vmul.f32 %v244, %v48
    %246 = vmatprep.subr.mxu0 0.0
    %247 = vmatpush1.msra.mxu0 %v242
    %248 = vmatprep.subr.mxu0 0.0
    %249 = vmatpush1.msra.mxu0 %v239
    %250 = vmatprep.subr.mxu0 0.0
    %251 = vmatpush1.msra.mxu0 %v245
    %252 = vmatprep.subr.mxu0 0.0
    %253 = vmatpush1.msra.mxu0 0.0
    %254 = vmatprep.subr.mxu0 0.0
    %255 = vmatpush1.msra.mxu0 0.0
    %256 = vmatprep.subr.mxu0 0.0
    %257 = vmatpush1.msra.mxu0 0.0
    %258 = vmatprep.subr.mxu0 0.0
    %259 = vmatpush1.msra.mxu0 0.0
    %260 = vmatprep.subr.mxu0 0.0
    %261 = vmatpush1.msra.mxu0 0.0
    %262 = vmatprep.subr.mxu0 0.0
    %263 = vmatpush1.msra.mxu0 0.0
    %264 = vmatprep.subr.mxu0 0.0
    %265 = vmatpush1.msra.mxu0 0.0
    %266 = vmatprep.subr.mxu0 0.0
    %267 = vmatpush1.msra.mxu0 0.0
    %268 = vmatprep.subr.mxu0 0.0
    %269 = vmatpush1.msra.mxu0 0.0
    %270 = vmatprep.subr.mxu0 0.0
    %271 = vmatpush1.msra.mxu0 0.0
    %272 = vmatprep.subr.mxu0 0.0
    %273 = vmatpush1.msra.mxu0 0.0
    %274 = vmatprep.subr.mxu0 0.0
    %275 = vmatpush1.msra.mxu0 0.0
    %276 = vmatprep.subr.mxu0 0.0
    %277 = vmatpush1.msra.mxu0 0.0
    %278 = vmatprep.subr.mxu0 0.0
    %279 = vmatpush1.msra.mxu0 0.0
    %280 = vmatprep.subr.mxu0 0.0
    %281 = vmatpush1.msra.mxu0 0.0
    %282 = vmatprep.subr.mxu0 0.0
    %283 = vmatpush1.msra.mxu0 0.0
    %284 = vmatprep.subr.mxu0 0.0
    %285 = vmatpush1.msra.mxu0 0.0
    %286 = vmatprep.subr.mxu0 0.0
    %287 = vmatpush1.msra.mxu0 0.0
    %288 = vmatprep.subr.mxu0 0.0
    %289 = vmatpush1.msra.mxu0 0.0
    %290 = vmatprep.subr.mxu0 0.0
    %291 = vmatpush1.msra.mxu0 0.0
    %292 = vmatprep.subr.mxu0 0.0
    %293 = vmatpush1.msra.mxu0 0.0
    %294 = vmatprep.subr.mxu0 0.0
    %295 = vmatpush1.msra.mxu0 0.0
    %296 = vmatprep.subr.mxu0 0.0
    %297 = vmatpush1.msra.mxu0 0.0
    %298 = vmatprep.subr.mxu0 0.0
    %299 = vmatpush1.msra.mxu0 0.0
    %300 = vmatprep.subr.mxu0 0.0
    %301 = vmatpush1.msra.mxu0 0.0
    %302 = vmatprep.subr.mxu0 0.0
    %303 = vmatpush1.msra.mxu0 0.0
    %304 = vmatprep.subr.mxu0 0.0
    %305 = vmatpush1.msra.mxu0 0.0
    %306 = vmatprep.subr.mxu0 0.0
    %307 = vmatpush1.msra.mxu0 0.0
    %308 = vmatprep.subr.mxu0 0.0
    %309 = vmatpush1.msra.mxu0 0.0
    %310 = vmatprep.mubr.f32.mxu0 0.0
    %311 = vmatmul.mubr.f32.gmra.mrb[0].mxu0 %v111
    %v312 = vpop.f32.mrb[0].mxu0
    %v313 = vadd.f32 %v99, %v312
    %v314 = vpop.f32.mrb[0].mxu0
    %315 = vmatprep.mubr.f32.mxu0 0.0
    %316 = vmatmul.mubr.f32.gmra.mrb[0].mxu0 %v113
    %v317 = vpop.f32.mrb[0].mxu0
    %v318 = vadd.f32 %v104, %v317
    %v319 = vpop.f32.mrb[0].mxu0
    %320 = vdwg.mxu0
    %v321 = vmax.f32 %v313, 0.0
    %v322 = vmax.f32 %v318, 0.0
    %v323 = vmul.f32 %v321, %v194
    %v324 = vmul.f32 %v322, %v198
    %325 = vadd.xlane.f32.xlu0 %v323
    %v326 = vpop.xlane.xlu0 %325
    %327 = vadd.xlane.f32.xlu0 %v324
    %v328 = vpop.xlane.xlu0 %327
    %v329 = vadd.f32 %v326, %v328
    %v330 = vrot.slane %v329, 4
    %v331 = vadd.f32 %v329, %v330
    %v332 = vrot.slane %v331, 2
    %v333 = vadd.f32 %v331, %v332
    %v334 = vrot.slane %v333, 1
    %v335 = vadd.f32 %v333, %v334
    %v336 = vmul.f32 %v335, 0.0078125
    %v337 = vadd.f32 %v336, %v39
    %339 = vrot.lane.b32.xlu0 %v337, 99
    %v340 = vpop.permute.xlu0 %339
    %vm342 = vcmask 8200
    %343 = vst.msk [vmem:[#allocation7] sm:$0x1] %vm342, %v340
    // Predicated region
    $region18: #{tpu_custom_call.1} parent=1 // pred_check
      _
    $region19: #{tpu_custom_call.1} parent=1 // pred_check_branch
      %345 = sbr.rel (0) target = $region21
    $region20: #{tpu_custom_call.1} parent=1 // pred_region
      %s347 = ssub.s32 16, 16
      %348 = vsyncadd [#allocation4], %s347
      %s350 = sshll.u32 [#allocation7], 4
      %s351 = int_to_ptr.vmem [resolvable:$true] %s350
      %353 = dma.vmem_to_hbm [thread:$0]  %s351, 16, %s2, [#allocation4]
    $region21: #{tpu_custom_call.1} parent=1 // pred_fallthru
      _
    // Predicated region
    $region22: #{tpu_custom_call.1} parent=1 // pred_check
      _
    $region23: #{tpu_custom_call.1} parent=1 // pred_check_branch
      %355 = sbr.rel (0) target = $region25
    $region24: #{tpu_custom_call.1} parent=1 // pred_region
      %356 = dma.done [#allocation4], 16
    $region25: #{tpu_custom_call.1} parent=1 // pred_fallthru
      _
    %357 = vsyncpa [#allocation3], 1
    %358 = vsyncpa [#allocation6], 1
    %359 = vsyncpa [#allocation4], 1

</llo_original>
